<compile_context>
chip_gen: v7x
topology: tpu7x:2x2x1
jax: 0.10.0
libtpu: 0.0.40
codegen_flags: <defaults>
</compile_context>

<pallas_src>
from typing import NamedTuple

import jax
import jax.numpy as jnp
from jax.experimental import pallas as pl
from jax.experimental.pallas import tpu as pltpu


def _round_up(x: int, m: int) -> int:
    return (x + m - 1) // m * m


def _vmem_capacity_bytes() -> int:
    """Per-core VMEM capacity; conservative fallback if the query is unavailable."""
    try:
        info = pltpu.get_tpu_info()
        cap = getattr(info, "vmem_capacity_bytes", None)
        if cap:
            return int(cap)
    except Exception:
        pass
    return 64 * 1024 * 1024   # v7x per-TensorCore VMEM (smallest of the three gens)


def _swishglu_kernel(x_ref, w_ref, b_ref, o_ref, acc_ref):
    """One (tm, 2*tn) fused matmul tile; SiLU-gated epilogue on the last K step."""
    # Fold the bias into accumulator init: the first K step has pipeline slack,
    # the last K step (finalize) sits right before the output store.
    @pl.when(pl.program_id(2) == 0)
    def _init():
        acc_ref[...] = jnp.broadcast_to(b_ref[...], acc_ref.shape)

    # Single wide MXU matmul covering both the projection and the gate halves.
    acc_ref[...] += jnp.dot(x_ref[...], w_ref[...],
                            preferred_element_type=jnp.float32)

    @pl.when(pl.program_id(2) == pl.num_programs(2) - 1)
    def _finalize():
        tn = o_ref.shape[-1]
        # Lane-aligned split (tn is a multiple of 128); read the halves directly
        # instead of materializing a full (tm, 2*tn) f32 temp.
        p = acc_ref[:, :tn]                      # projected half
        g = acc_ref[:, tn:]                      # gate half (bias already added)
        # SiLU: sigmoid on the EUP, multiplies on the VPU; f32 epilogue is safe
        # on all generations (v5e has no bf16 VPU/EUP).
        o_ref[...] = (p * (g * jax.nn.sigmoid(g))).astype(o_ref.dtype)


class SwishGLUParams(NamedTuple):
    w_fused: jax.Array    # (k_pad, 2*n_pad) block-interleaved [Wp blk | Wg blk]
    b_fused: jax.Array    # (1, 2*n_pad) float32 fused bias
    out_dim: int
    in_dim: int
    tn: int               # effective (clamped) N tile
    tk: int               # effective (clamped) K tile


def swishglu_prepare(w, b, *, tn=512, tk=1024,
                     matmul_dtype=jnp.bfloat16) -> SwishGLUParams:
    """One-time weight prep (model-load time, NOT per forward call).

    w: (2*out_dim, in_dim) PyTorch nn.Linear weight, b: (2*out_dim,).
    Produces a block-interleaved, padded (K_pad, 2*N_pad) fused weight where the
    n-th tn-block holds [Wp block n | Wg block n], plus the matching fused bias.
    MXU operands default to bf16 (f32 accumulate keeps accuracy).
    """
    two_out, in_dim = w.shape
    out_dim = two_out // 2

    # Clamp tiles to the real problem size (multiples of 128 for lane density).
    tn = min(_round_up(tn, 128), _round_up(out_dim, 128))
    tk = min(_round_up(tk, 128), _round_up(in_dim, 128))
    k_pad = _round_up(in_dim, tk)
    n_pad = _round_up(out_dim, tn)
    nb = n_pad // tn
    wdt = matmul_dtype if matmul_dtype is not None else w.dtype

    wp = jnp.pad(w[:out_dim, :].T, ((0, k_pad - in_dim), (0, n_pad - out_dim)))
    wg = jnp.pad(w[out_dim:, :].T, ((0, k_pad - in_dim), (0, n_pad - out_dim)))
    w_fused = jnp.stack(
        [wp.reshape(k_pad, nb, tn), wg.reshape(k_pad, nb, tn)], axis=2
    ).reshape(k_pad, 2 * n_pad).astype(wdt)

    bp = jnp.pad(b[:out_dim], (0, n_pad - out_dim)).reshape(nb, tn)
    bg = jnp.pad(b[out_dim:], (0, n_pad - out_dim)).reshape(nb, tn)
    b_fused = jnp.stack([bp, bg], axis=1).reshape(1, 2 * n_pad).astype(jnp.float32)

    return SwishGLUParams(w_fused, b_fused, out_dim, in_dim, tn, tk)

    # TODO(synk): optional fp8 weight path (per-block scales in the epilogue) for v7x.


def swishglu_apply(x, params: SwishGLUParams, *, tm=512,
                   matmul_dtype=jnp.bfloat16):
    """x: (..., in_dim) -> (..., out_dim) = projected * SiLU(gate)."""
    w_fused, b_fused, out_dim, in_dim, tn, tk = params
    k_pad = w_fused.shape[0]
    n_pad = w_fused.shape[1] // 2
    assert x.shape[-1] == in_dim, "x last dim must equal in_dim"

    lead = x.shape[:-1]
    out_dtype = x.dtype
    x2d = x.reshape(-1, in_dim)
    m = x2d.shape[0]

    # Pick tm (always a multiple of 16 — bf16 sublane packing) so that M padding
    # is minimized even when m is just over a tile boundary.
    tm_max = max(16, _round_up(tm, 16))
    m16 = _round_up(m, 16)
    if m16 <= tm_max:
        tm = m16
    else:
        n_m_tiles = pl.cdiv(m, tm_max)
        tm = _round_up(pl.cdiv(m, n_m_tiles), 16)

    # Guarantee >= 2 tiles along a "parallel" axis so both TensorCores of a
    # dual-core part (v7x) get work (harmless on single-TC v5e/v6e).
    if (_round_up(m, tm) // tm) == 1 and (n_pad // tn) == 1 and tm > 16:
        tm = _round_up(pl.cdiv(tm, 2), 16)
    m_pad = _round_up(m, tm)

    xdt = matmul_dtype if matmul_dtype is not None else x.dtype
    # Only touch x when strictly required (pass x already in bf16 with aligned
    # dims to make this a pure no-op in a real model).
    if m_pad != m or k_pad != in_dim:
        x2d = jnp.pad(x2d, ((0, m_pad - m), (0, k_pad - in_dim)))
    if x2d.dtype != xdt:
        x2d = x2d.astype(xdt)

    grid = (m_pad // tm, n_pad // tn, k_pad // tk)

    # VMEM budget: double-buffered x / fused-weight / bias / out tiles + f32 acc.
    itx = jnp.dtype(xdt).itemsize
    itw = jnp.dtype(w_fused.dtype).itemsize
    ito = jnp.dtype(out_dtype).itemsize
    per_step = (tm * tk * itx) + (tk * 2 * tn * itw) + (2 * tn * 4) + (tm * tn * ito)
    need = 2 * per_step + tm * 2 * tn * 4
    cap = _vmem_capacity_bytes()
    vmem_limit = int(min(max(need + (4 << 20), 32 << 20), (cap * 3) // 4))

    out2d = pl.pallas_call(
        _swishglu_kernel,
        out_shape=jax.ShapeDtypeStruct((m_pad, n_pad), out_dtype),
        grid_spec=pltpu.PrefetchScalarGridSpec(
            num_scalar_prefetch=0,
            grid=grid,
            in_specs=[
                pl.BlockSpec((tm, tk), lambda i, j, k: (i, k)),        # x tile
                pl.BlockSpec((tk, 2 * tn), lambda i, j, k: (k, j)),    # fused [Wp|Wg]
                pl.BlockSpec((1, 2 * tn), lambda i, j, k: (0, j)),     # fused bias
            ],
            out_specs=pl.BlockSpec((tm, tn), lambda i, j, k: (i, j)),  # lane-dense
            scratch_shapes=[pltpu.VMEM((tm, 2 * tn), jnp.float32)],
        ),
        compiler_params=pltpu.CompilerParams(
            dimension_semantics=("parallel", "parallel", "arbitrary"),
            vmem_limit_bytes=vmem_limit,
        ),
    )(x2d, w_fused, b_fused)

    if m_pad != m or n_pad != out_dim:
        out2d = out2d[:m, :out_dim]
    return out2d.reshape(*lead, out_dim)


def swishglu(x, w, b, *, tm=512, tn=512, tk=1024, matmul_dtype=jnp.bfloat16):
    """Convenience one-shot wrapper (prep + apply). Prefer calling
    swishglu_prepare once and reusing its result across forward calls."""
    params = swishglu_prepare(w, b, tn=tn, tk=tk, matmul_dtype=matmul_dtype)
    return swishglu_apply(x, params, tm=tm, matmul_dtype=matmul_dtype)


def swishglu_reference(x, w, b):
    y = jnp.einsum("...i,oi->...o", x, w) + b
    out_dim = w.shape[0] // 2
    projected, gate = y[..., :out_dim], y[..., out_dim:]
    return projected * (gate * jax.nn.sigmoid(gate))


if __name__ == "__main__":
    # Small shapes that still exercise padding + multi-block (M, N, K) grids:
    # M = 2*72 = 144, out_dim = 192 (pads to 256), in_dim = 256.
    in_dim, out_dim = 256, 192
    batch, seq = 2, 72

    key = jax.random.PRNGKey(0)
    kx, kw, kb = jax.random.split(key, 3)

    # Deterministic "PyTorch-style" init: U(-1/sqrt(in_dim), 1/sqrt(in_dim))
    bound = 1.0 / (in_dim ** 0.5)
    w = jax.random.uniform(kw, (2 * out_dim, in_dim), jnp.float32, -bound, bound)
    b = jax.random.uniform(kb, (2 * out_dim,), jnp.float32, -bound, bound)
    x = jax.random.normal(kx, (batch, seq, in_dim), jnp.float32)

    ref = swishglu_reference(x, w, b)

    # --- explicit f32-MXU path, small tiles -> multi-block (M=3, N=2, K=2) grid
    p32 = swishglu_prepare(w, b, tn=128, tk=128, matmul_dtype=jnp.float32)
    out32 = swishglu_apply(x, p32, tm=64, matmul_dtype=jnp.float32)
    out32 = jax.block_until_ready(out32)
    assert out32.shape == (batch, seq, out_dim)
    assert jnp.allclose(out32, ref, atol=1e-4, rtol=1e-4), "f32 mismatch vs reference"

    # --- default path: bf16 MXU operands, auto-clamped large tiles, f32 epilogue
    pbf = swishglu_prepare(w, b)            # defaults: bf16, tn/tk clamped to 256
    outbf = swishglu_apply(x, pbf)          # default tm=512 -> clamped / split for 2 TCs
    outbf = jax.block_until_ready(outbf)
    assert outbf.shape == (batch, seq, out_dim)
    assert jnp.allclose(outbf, ref, atol=1e-1, rtol=1e-1), "bf16 mismatch vs reference"

    print("KERNEL_OK")
</pallas_src>

<mosaic_0001>
module attributes {stable_mosaic.version = 11 : i64} {
  func.func @_swishglu_kernel(%arg0: i32, %arg1: i32, %arg2: i32, %arg3: memref<48x128xf32, #tpu.memory_space<vmem>>, %arg4: memref<128x256xf32, #tpu.memory_space<vmem>>, %arg5: memref<1x256xf32, #tpu.memory_space<vmem>>, %arg6: memref<48x128xf32, #tpu.memory_space<vmem>>, %arg7: memref<48x256xf32, #tpu.memory_space<vmem>>) attributes {dimension_semantics = [#tpu.dimension_semantics<parallel>, #tpu.dimension_semantics<parallel>, #tpu.dimension_semantics<arbitrary>], iteration_bounds = array<i64: 3, 2, 2>, scalar_prefetch = 0 : i64, scratch_operands = 1 : i64, tpu.core_type = #tpu.core_type<tc>, window_params = [{transform_indices = @transform_0, window_bounds = array<i64: 48, 128>}, {transform_indices = @transform_1, window_bounds = array<i64: 128, 256>}, {transform_indices = @transform_2, window_bounds = array<i64: 1, 256>}, {transform_indices = @transform_3, window_bounds = array<i64: 48, 128>}]} {
    %c0_i32 = arith.constant 0 : i32
    %0 = arith.cmpi eq, %arg2, %c0_i32 : i32
    %1 = arith.extui %0 : i1 to i32
    %c0_i32_0 = arith.constant 0 : i32
    %2 = arith.cmpi ne, %1, %c0_i32_0 : i32
    scf.if %2 {
      %c0_9 = arith.constant 0 : index
      %c0_10 = arith.constant 0 : index
      %12 = vector.load %arg5[%c0_9, %c0_10] : memref<1x256xf32, #tpu.memory_space<vmem>>, vector<1x256xf32>
      %13 = vector.shape_cast %12 : vector<1x256xf32> to vector<1x256xf32>
      %14 = vector.broadcast %13 : vector<1x256xf32> to vector<48x256xf32>
      %c0_11 = arith.constant 0 : index
      %c0_12 = arith.constant 0 : index
      %15 = vector.load %arg7[%c0_11, %c0_12] : memref<48x256xf32, #tpu.memory_space<vmem>>, vector<48x256xf32>
      tpu.vector_store %arg7[%c0_11, %c0_12], %14 {strides = array<i32>} : memref<48x256xf32, #tpu.memory_space<vmem>>, vector<48x256xf32>,
    } else {
    }
    %c0 = arith.constant 0 : index
    %c0_1 = arith.constant 0 : index
    %3 = vector.load %arg7[%c0, %c0_1] : memref<48x256xf32, #tpu.memory_space<vmem>>, vector<48x256xf32>
    %c0_2 = arith.constant 0 : index
    %c0_3 = arith.constant 0 : index
    %4 = vector.load %arg3[%c0_2, %c0_3] : memref<48x128xf32, #tpu.memory_space<vmem>>, vector<48x128xf32>
    %c0_4 = arith.constant 0 : index
    %c0_5 = arith.constant 0 : index
    %5 = vector.load %arg4[%c0_4, %c0_5] : memref<128x256xf32, #tpu.memory_space<vmem>>, vector<128x256xf32>
    %cst = arith.constant dense<0.000000e+00> : vector<48x256xf32>
    %6 = tpu.matmul %4, %5, %cst {dimension_numbers = #tpu.dot_dimension_numbers<[1], [0], [0], [1], [0, 0, 1, 1], [], []>} : vector<48x128xf32>, vector<128x256xf32>, vector<48x256xf32> -> vector<48x256xf32>
    %7 = arith.addf %3, %6 : vector<48x256xf32>
    %c0_6 = arith.constant 0 : index
    %c0_7 = arith.constant 0 : index
    %8 = vector.load %arg7[%c0_6, %c0_7] : memref<48x256xf32, #tpu.memory_space<vmem>>, vector<48x256xf32>
    tpu.vector_store %arg7[%c0_6, %c0_7], %7 {strides = array<i32>} : memref<48x256xf32, #tpu.memory_space<vmem>>, vector<48x256xf32>,
    %c1_i32 = arith.constant 1 : i32
    %9 = arith.cmpi eq, %arg2, %c1_i32 : i32
    %10 = arith.extui %9 : i1 to i32
    %c0_i32_8 = arith.constant 0 : i32
    %11 = arith.cmpi ne, %10, %c0_i32_8 : i32
    scf.if %11 {
      %c0_9 = arith.constant 0 : index
      %c0_10 = arith.constant 0 : index
      %12 = vector.load %arg7[%c0_9, %c0_10] : memref<48x256xf32, #tpu.memory_space<vmem>>, vector<48x128xf32>
      %c0_11 = arith.constant 0 : index
      %c128 = arith.constant 128 : index
      %13 = vector.load %arg7[%c0_11, %c128] : memref<48x256xf32, #tpu.memory_space<vmem>>, vector<48x128xf32>
      %14 = arith.negf %13 : vector<48x128xf32>
      %15 = math.exp %14 : vector<48x128xf32>
      %cst_12 = arith.constant 1.000000e+00 : f32
      %16 = vector.broadcast %cst_12 : f32 to vector<48x128xf32>
      %17 = arith.addf %16, %15 : vector<48x128xf32>
      %18 = arith.divf %16, %17 : vector<48x128xf32>
      %19 = arith.mulf %13, %18 : vector<48x128xf32>
      %20 = arith.mulf %12, %19 : vector<48x128xf32>
      %c0_13 = arith.constant 0 : index
      %c0_14 = arith.constant 0 : index
      %21 = vector.load %arg6[%c0_13, %c0_14] : memref<48x128xf32, #tpu.memory_space<vmem>>, vector<48x128xf32>
      tpu.vector_store %arg6[%c0_13, %c0_14], %20 {strides = array<i32>} : memref<48x128xf32, #tpu.memory_space<vmem>>, vector<48x128xf32>,
    } else {
    }
    return
  }
  func.func @transform_0(%arg0: i32, %arg1: i32, %arg2: i32) -> (i32, i32) {
    %c0_i32 = arith.constant 0 : i32
    return %arg0, %arg2 : i32, i32
  }
  func.func @transform_1(%arg0: i32, %arg1: i32, %arg2: i32) -> (i32, i32) {
    %c0_i32 = arith.constant 0 : i32
    return %arg2, %arg1 : i32, i32
  }
  func.func @transform_2(%arg0: i32, %arg1: i32, %arg2: i32) -> (i32, i32) {
    %c0_i32 = arith.constant 0 : i32
    %c0_i32_0 = arith.constant 0 : i32
    return %c0_i32, %arg1 : i32, i32
  }
  func.func @transform_3(%arg0: i32, %arg1: i32, %arg2: i32) -> (i32, i32) {
    %c0_i32 = arith.constant 0 : i32
    return %arg0, %arg1 : i32, i32
  }
}

</mosaic_0001>

<llo_original>
// kernel: tpu_custom_call.1
$region0: #{tpu_custom_call.1}
  #allocation0 [shape = 'u32[]', space=smem, size = 0x4, offset = 0x4, fixed_abs, tag = 'smem constant byte address 0x4 - core index']
  #allocation1 [shape = 'u32[144,128]{1,0:T(1,128)}', space=vmem, size = 0x12000, scoped, tag = 'internal scratch']
  #allocation2 [shape = 'f32[48,256]{1,0:T(8,128)}', space=vmem, size = 0xc000, scoped, tag = 'scratch operand']
  %s0 = inlined_call_operand.hbm [shape: f32[144,256], index: 0, kind: input, shape index: {}]
  %s1 = inlined_call_operand.hbm [shape: f32[256,512], index: 1, kind: input, shape index: {}]
  %s2 = inlined_call_operand.vmem [shape: f32[1,512], index: 2, kind: input, shape index: {}]
  %s3 = inlined_call_operand.hbm [shape: f32[144,256], index: 3, kind: output, shape index: {}]
  %s4 = sld [smem:[#allocation0]]
  $region61: #{tpu_custom_call.1} parent=0
    _
  %s6 = ssub.s32 1, %s4
  %s7 = scalar_select 0, %s6, %s4
  $region1: #{tpu_custom_call.1} parent=0
    #allocation3 [shape = 'u8[49152]{0}', space=vmem, size = 0xc000, scoped, tag = 'input window, operand 0']
    #allocation4 [shape = 's32[2]{0}', space=sflag, size = 0x8, scoped, tag = 'scoped memory for tpu_custom_call.1']
    #allocation5 [shape = 's32[2]{0}', space=sflag, size = 0x8, scoped, tag = 'scoped memory for tpu_custom_call.1']
    #allocation6 [shape = 'u8[262144]{0}', space=vmem, size = 0x40000, scoped, tag = 'input window, operand 1']
    #allocation7 [shape = 's32[2]{0}', space=sflag, size = 0x8, scoped, tag = 'scoped memory for tpu_custom_call.1']
    #allocation8 [shape = 'u8[49152]{0}', space=vmem, size = 0xc000, scoped, tag = 'output window, operand 0']
    %8 = vsyncpa [#allocation4], 0
    %s9 = scalar_lea.sflag [#allocation4], 1
    %10 = vsyncpa %s9, 0
    %11 = vsyncpa [#allocation7], 0
    %s12 = scalar_lea.sflag [#allocation7], 1
    %13 = vsyncpa %s12, 0
    %14 = vsyncpa [#allocation5], 0
    %s15 = scalar_lea.sflag [#allocation5], 1
    %16 = vsyncpa %s15, 0
    loop: start=0, step=1, limit=14
    $region2: #{tpu_custom_call.1} parent=1 // loop_pre_header
      _
    $region3: #{tpu_custom_call.1} parent=1 // loop_header
      %s18 = sphi 0, %s22
      %p19 = scmp.ge.s32.totalorder %s18, 14
      %s25 = sphi 0, %s44
      %s26 = sphi 0, %s40
      %s27 = sphi 0, %s36
      %s28 = sphi 0, %s25
      %s29 = sphi 0, %s26
      %s30 = sphi 0, %s27
      %s31 = sphi 0, %s28
      %s32 = sphi 0, %s29
      %s33 = sphi 0, %s30
      %s49 = sphi 0, %s51
      %s52 = sphi 0, %s49
      %s53 = sphi 0, %s52
      %s69 = sphi 0, %s53
      %s77 = sphi 0, %s79
      %s80 = sphi 0, %s77
      %s81 = sphi 0, %s80
      %s97 = sphi 0, %s81
      %s103 = sphi 0, %s105
      %s106 = sphi 0, %s103
      %s107 = sphi 0, %s106
      %s123 = sphi 0, %s107
      %s131 = sphi 0, %s133
      %s134 = sphi 0, %s131
      %s135 = sphi 0, %s134
      %s151 = sphi 0, %s135
    $region4: #{tpu_custom_call.1} parent=1 // loop_header_branch
      %21 = sbr.rel (%p19) target = $region8
    $region5: #{tpu_custom_call.1} parent=1 // loop_body
      %s23 = ssub.s32 %s18, 1
      %s24 = ssub.s32 %s18, 2
      %s34 = sadd.s32 1, %s27
      %p35 = scmp.ge.s32.totalorder %s34, 2
      %s36 = scalar_select %p35, 0, %s34
      %s37 = sadd.s32 1, %s26
      %s38 = scalar_select %p35, %s37, %s26
      %p39 = scmp.ge.s32.totalorder %s38, 2
      %s40 = scalar_select %p39, 0, %s38
      %s41 = sadd.s32 1, %s25
      %s42 = scalar_select %p39, %s41, %s25
      %p43 = scmp.ge.s32.totalorder %s42, 3
      %s44 = scalar_select %p43, 0, %s42
      %s45 = ssub.s32 %s25, %s44
      %s46 = ssub.s32 %s27, %s36
      %s47 = sor.u32 %s45, %s46
      %p48 = scmp.eq.s32.totalorder %s47, 0
      %s50 = sadd.s32 %s49, 1
      %s51 = scalar_select %p48, %s49, %s50
      %p54 = pneg %p48
      %p55 = scmp.eq.s32.totalorder %s18, 11
      %p56 = por %p54, %p55
      %p57 = scmp.ne.s32.totalorder %s49, %s52
      %p58 = scmp.eq.s32.totalorder %s18, 0
      %p59 = por %p57, %p58
      %p60 = scmp.ne.s32.totalorder %s49, %s52
      %p61 = scmp.eq.s32.totalorder %s23, 11
      %p62 = por %p60, %p61
      %p63 = scmp.ne.s32.totalorder %s52, %s53
      %p64 = scmp.eq.s32.totalorder %s23, 0
      %p65 = por %p63, %p64
      %p66 = scmp.ne.s32.totalorder %s52, %s53
      %p67 = scmp.eq.s32.totalorder %s24, 11
      %p68 = por %p66, %p67
      %p70 = scmp.ne.s32.totalorder %s53, %s69
      %p71 = scmp.eq.s32.totalorder %s24, 0
      %p72 = por %p70, %p71
      %s73 = ssub.s32 %s27, %s36
      %s74 = ssub.s32 %s26, %s40
      %s75 = sor.u32 %s73, %s74
      %p76 = scmp.eq.s32.totalorder %s75, 0
      %s78 = sadd.s32 %s77, 1
      %s79 = scalar_select %p76, %s77, %s78
      %p82 = pneg %p76
      %p83 = scmp.eq.s32.totalorder %s18, 11
      %p84 = por %p82, %p83
      %p85 = scmp.ne.s32.totalorder %s77, %s80
      %p86 = scmp.eq.s32.totalorder %s18, 0
      %p87 = por %p85, %p86
      %p88 = scmp.ne.s32.totalorder %s77, %s80
      %p89 = scmp.eq.s32.totalorder %s23, 11
      %p90 = por %p88, %p89
      %p91 = scmp.ne.s32.totalorder %s80, %s81
      %p92 = scmp.eq.s32.totalorder %s23, 0
      %p93 = por %p91, %p92
      %p94 = scmp.ne.s32.totalorder %s80, %s81
      %p95 = scmp.eq.s32.totalorder %s24, 11
      %p96 = por %p94, %p95
      %p98 = scmp.ne.s32.totalorder %s81, %s97
      %p99 = scmp.eq.s32.totalorder %s24, 0
      %p100 = por %p98, %p99
      %s101 = ssub.s32 %s26, %s40
      %p102 = scmp.eq.s32.totalorder %s101, 0
      %s104 = sadd.s32 %s103, 1
      %s105 = scalar_select %p102, %s103, %s104
      %p108 = pneg %p102
      %p109 = scmp.eq.s32.totalorder %s18, 11
      %p110 = por %p108, %p109
      %p111 = scmp.ne.s32.totalorder %s103, %s106
      %p112 = scmp.eq.s32.totalorder %s18, 0
      %p113 = por %p111, %p112
      %p114 = scmp.ne.s32.totalorder %s103, %s106
      %p115 = scmp.eq.s32.totalorder %s23, 11
      %p116 = por %p114, %p115
      %p117 = scmp.ne.s32.totalorder %s106, %s107
      %p118 = scmp.eq.s32.totalorder %s23, 0
      %p119 = por %p117, %p118
      %p120 = scmp.ne.s32.totalorder %s106, %s107
      %p121 = scmp.eq.s32.totalorder %s24, 11
      %p122 = por %p120, %p121
      %p124 = scmp.ne.s32.totalorder %s107, %s123
      %p125 = scmp.eq.s32.totalorder %s24, 0
      %p126 = por %p124, %p125
      %s127 = ssub.s32 %s25, %s44
      %s128 = ssub.s32 %s26, %s40
      %s129 = sor.u32 %s127, %s128
      %p130 = scmp.eq.s32.totalorder %s129, 0
      %s132 = sadd.s32 %s131, 1
      %s133 = scalar_select %p130, %s131, %s132
      %p136 = pneg %p130
      %p137 = scmp.eq.s32.totalorder %s18, 11
      %p138 = por %p136, %p137
      %p139 = scmp.ne.s32.totalorder %s131, %s134
      %p140 = scmp.eq.s32.totalorder %s18, 0
      %p141 = por %p139, %p140
      %p142 = scmp.ne.s32.totalorder %s131, %s134
      %p143 = scmp.eq.s32.totalorder %s23, 11
      %p144 = por %p142, %p143
      %p145 = scmp.ne.s32.totalorder %s134, %s135
      %p146 = scmp.eq.s32.totalorder %s23, 0
      %p147 = por %p145, %p146
      %p148 = scmp.ne.s32.totalorder %s134, %s135
      %p149 = scmp.eq.s32.totalorder %s24, 11
      %p150 = por %p148, %p149
      %p152 = scmp.ne.s32.totalorder %s135, %s151
      %p153 = scmp.eq.s32.totalorder %s24, 0
      %p154 = por %p152, %p153
      %p155 = scmp.le.s32.totalorder 1, %s18
      %p156 = scmp.lt.s32.totalorder %s18, 13
      %p157 = pnand %p155, %p156
      %p158 = pneg %p157
      // Predicated region
      $region9: #{tpu_custom_call.1} parent=5 // pred_check
        _
      $region10: #{tpu_custom_call.1} parent=5 // pred_check_branch
        %160 = sbr.rel (%p157) target = $region12
      $region11: #{tpu_custom_call.1} parent=5 // pred_region
        %s161 = ssub.s32 %s18, 1
      $region12: #{tpu_custom_call.1} parent=5 // pred_fallthru
        _
      %p162 = scmp.lt.s32.totalorder %s18, 12
      // Predicated region
      $region13: #{tpu_custom_call.1} parent=5 // pred_check
        %p163 = pneg %p162
      $region14: #{tpu_custom_call.1} parent=5 // pred_check_branch
        %165 = sbr.rel (%p163) target = $region16
      $region15: #{tpu_custom_call.1} parent=5 // pred_region
        // Predicated region
        $region17: #{tpu_custom_call.1} parent=15 // pred_check
          %p166 = pneg %p59
        $region18: #{tpu_custom_call.1} parent=15 // pred_check_branch
          %168 = sbr.rel (%p166) target = $region20
        $region19: #{tpu_custom_call.1} parent=15 // pred_region
          %s169 = sand.u32 %s49, 1
          %s170 = scalar_lea.sflag [#allocation4], %s169
          %s171 = sand.u32 %s49, 1
          %s172 = smul.addr %s171, 48
          %s173 = scalar_lea.vmem [#allocation3], %s172
          %s174 = smul.u32 6, %s25
          %s176 = ssub.s32 768, 768
          %177 = vsyncadd %s170, %s176
          %s178 = smul.addr %s174, 2
          %s179 = sadd.s32 %s27, %s178
          %s180 = smul.addr %s179, 128
          %s181 = scalar_lea.hbm %s0, %s180
          %s182 = sshll.u32 %s173, 4
          %s183 = int_to_ptr.vmem [resolvable:$true] %s182
          %188 = dma.hbm_to_vmem [thread:$0]  %s181, 768, %s183, %s170, 256, 128, 8
        $region20: #{tpu_custom_call.1} parent=15 // pred_fallthru
          _
        // Predicated region
        $region21: #{tpu_custom_call.1} parent=15 // pred_check
          %p189 = pneg %p87
        $region22: #{tpu_custom_call.1} parent=15 // pred_check_branch
          %191 = sbr.rel (%p189) target = $region24
        $region23: #{tpu_custom_call.1} parent=15 // pred_region
          %s192 = sand.u32 %s77, 1
          %s193 = scalar_lea.sflag [#allocation7], %s192
          %s194 = sand.u32 %s77, 1
          %s195 = smul.addr %s194, 256
          %s196 = scalar_lea.vmem [#allocation6], %s195
          %s197 = smul.u32 16, %s27
          %s198 = smul.u32 2, %s26
          %s200 = ssub.s32 4096, 4096
          %201 = vsyncadd %s193, %s200
          %s202 = smul.addr %s197, 4
          %s203 = sadd.s32 %s198, %s202
          %s204 = smul.addr %s203, 128
          %s205 = scalar_lea.hbm %s1, %s204
          %s206 = sshll.u32 %s196, 4
          %s207 = int_to_ptr.vmem [resolvable:$true] %s206
          %212 = dma.hbm_to_vmem [thread:$0]  %s205, 4096, %s207, %s193, 512, 256, 16
        $region24: #{tpu_custom_call.1} parent=15 // pred_fallthru
          _
        // Predicated region
        $region25: #{tpu_custom_call.1} parent=15 // pred_check
          %p213 = pneg %p113
        $region26: #{tpu_custom_call.1} parent=15 // pred_check_branch
          %215 = sbr.rel (%p213) target = $region28
        $region27: #{tpu_custom_call.1} parent=15 // pred_region
          %s216 = smul.u32 2, %s26
          %p217 = scmp.lt.s32.totalorder %s216, 3
          %s218 = scalar_select %p217, %s216, 3
          %s219 = scalar_lea.vmem %s2, %s218
          %s220 = smul.u32 2, %s26
        $region28: #{tpu_custom_call.1} parent=15 // pred_fallthru
          _
      $region16: #{tpu_custom_call.1} parent=5 // pred_fallthru
        _
      %p221 = scmp.le.s32.totalorder 1, %s18
      %p222 = scmp.lt.s32.totalorder %s18, 13
      %p223 = pnand %p221, %p222
      %p224 = pneg %p223
      // Predicated region
      $region29: #{tpu_custom_call.1} parent=5 // pred_check
        _
      $region30: #{tpu_custom_call.1} parent=5 // pred_check_branch
        %226 = sbr.rel (%p223) target = $region32
      $region31: #{tpu_custom_call.1} parent=5 // pred_region
        %s227 = ssub.s32 %s18, 1
        %s228 = sand.u32 %s52, 1
        %s229 = scalar_lea.sflag [#allocation4], %s228
        %s230 = sand.u32 %s52, 1
        %s231 = smul.addr %s230, 48
        %s232 = scalar_lea.vmem [#allocation3], %s231
        // Predicated region
        $region33: #{tpu_custom_call.1} parent=31 // pred_check
          %p233 = pneg %p65
        $region34: #{tpu_custom_call.1} parent=31 // pred_check_branch
          %235 = sbr.rel (%p233) target = $region36
        $region35: #{tpu_custom_call.1} parent=31 // pred_region
          %236 = dma.done %s229, 768
        $region36: #{tpu_custom_call.1} parent=31 // pred_fallthru
          _
        %s237 = sand.u32 %s80, 1
        %s238 = scalar_lea.sflag [#allocation7], %s237
        %s239 = sand.u32 %s80, 1
        %s240 = smul.addr %s239, 256
        %s241 = scalar_lea.vmem [#allocation6], %s240
        // Predicated region
        $region37: #{tpu_custom_call.1} parent=31 // pred_check
          %p242 = pneg %p93
        $region38: #{tpu_custom_call.1} parent=31 // pred_check_branch
          %244 = sbr.rel (%p242) target = $region40
        $region39: #{tpu_custom_call.1} parent=31 // pred_region
          %245 = dma.done %s238, 4096
        $region40: #{tpu_custom_call.1} parent=31 // pred_fallthru
          _
        %s246 = sand.u32 %s52, 1
        %s247 = scalar_lea.sflag [#allocation4], %s246
        %s248 = sand.u32 %s52, 1
        %s249 = smul.addr %s248, 48
        %s250 = scalar_lea.vmem [#allocation3], %s249
        %p251 = pneg %p65
        %p252 = pneg %p62
        %s253 = sand.u32 %s80, 1
        %s254 = scalar_lea.sflag [#allocation7], %s253
        %s255 = sand.u32 %s80, 1
        %s256 = smul.addr %s255, 256
        %s257 = scalar_lea.vmem [#allocation6], %s256
        %p258 = pneg %p93
        %p259 = pneg %p90
        %s260 = smul.u32 2, %s29
        %p261 = scmp.lt.s32.totalorder %s260, 3
        %s262 = scalar_select %p261, %s260, 3
        %s263 = scalar_lea.vmem %s2, %s262
        %p264 = pneg %p119
        %p265 = pneg %p116
        %p266 = pneg %p147
        %p267 = pneg %p144
        %s268 = sand.u32 %s134, 1
        %s269 = scalar_lea.sflag [#allocation5], %s268
        %s270 = sand.u32 %s134, 1
        %s271 = smul.addr %s270, 48
        %s272 = scalar_lea.vmem [#allocation8], %s271
        %s273 = smul.u32 6, %s28
        %s274 = smul.u32 16, %s30
        %s275 = smul.u32 2, %s29
        %s276 = smul.u32 2, %s29
        %p277 = scmp.lt.s32.totalorder %s276, 3
        %s278 = scalar_select %p277, %s276, 3
        %s279 = scalar_lea.vmem %s2, %s278
        %s280 = smul.u32 2, %s29
        %s281 = smul.u32 6, %s28
        %p282 = scmp.eq.s32.totalorder %s30, 0
        // Predicated region
        $region41: #{tpu_custom_call.1} parent=31 // pred_check
          %p283 = pneg %p282
        $region42: #{tpu_custom_call.1} parent=31 // pred_check_branch
          %285 = sbr.rel (%p283) target = $region44
        $region43: #{tpu_custom_call.1} parent=31 // pred_region
          %v286 = vld [vmem:[%s279] sm:$0x3]
          %v288 = vlaneseq
          %v289 = vshrl.u32 %v288, 7
          %v290 = vsub.s32 0, %v289
          %v291 = vrot.slane %v286, %v290
          %v292 = vlaneseq
          %v293 = vshrl.u32 %v292, 7
          %v294 = vsub.s32 1, %v293
          %v295 = vrot.slane %v286, %v294
          %298 = vst [vmem:[#allocation2] sm:$0xff] %v291
          %299 = vst [vmem:[#allocation2 + $0x8] sm:$0xff] %v295
          %300 = vst [vmem:[#allocation2 + $0x10] sm:$0xff] %v291
          %301 = vst [vmem:[#allocation2 + $0x18] sm:$0xff] %v295
          %302 = vst [vmem:[#allocation2 + $0x20] sm:$0xff] %v291
          %303 = vst [vmem:[#allocation2 + $0x28] sm:$0xff] %v295
          %304 = vst [vmem:[#allocation2 + $0x30] sm:$0xff] %v291
          %305 = vst [vmem:[#allocation2 + $0x38] sm:$0xff] %v295
          %306 = vst [vmem:[#allocation2 + $0x40] sm:$0xff] %v291
          %307 = vst [vmem:[#allocation2 + $0x48] sm:$0xff] %v295
          %308 = vst [vmem:[#allocation2 + $0x50] sm:$0xff] %v291
          %309 = vst [vmem:[#allocation2 + $0x58] sm:$0xff] %v295
        $region44: #{tpu_custom_call.1} parent=31 // pred_fallthru
          _
        %v310 = vld [vmem:[#allocation2] sm:$0xff]
        %v311 = vld [vmem:[#allocation2 + $0x8] sm:$0xff]
        %v312 = vld [vmem:[#allocation2 + $0x10] sm:$0xff]
        %v313 = vld [vmem:[#allocation2 + $0x18] sm:$0xff]
        %v314 = vld [vmem:[#allocation2 + $0x20] sm:$0xff]
        %v315 = vld [vmem:[#allocation2 + $0x28] sm:$0xff]
        %v316 = vld [vmem:[#allocation2 + $0x30] sm:$0xff]
        %v317 = vld [vmem:[#allocation2 + $0x38] sm:$0xff]
        %v318 = vld [vmem:[#allocation2 + $0x40] sm:$0xff]
        %v319 = vld [vmem:[#allocation2 + $0x48] sm:$0xff]
        %v320 = vld [vmem:[#allocation2 + $0x50] sm:$0xff]
        %v321 = vld [vmem:[#allocation2 + $0x58] sm:$0xff]
        %v322 = vld [vmem:[%s232] sm:$0xff]
        %v323 = vld [vmem:[%s232 + $0x8] sm:$0xff]
        %v324 = vld [vmem:[%s232 + $0x10] sm:$0xff]
        %v325 = vld [vmem:[%s232 + $0x18] sm:$0xff]
        %v326 = vld [vmem:[%s232 + $0x20] sm:$0xff]
        %v327 = vld [vmem:[%s232 + $0x28] sm:$0xff]
        %v328 = vld [vmem:[%s241] sm:$0xff]
        %v329 = vld [vmem:[%s241 + $0x8] sm:$0xff]
        %v330 = vld [vmem:[%s241 + $0x10] sm:$0xff]
        %v331 = vld [vmem:[%s241 + $0x18] sm:$0xff]
        %v332 = vld [vmem:[%s241 + $0x20] sm:$0xff]
        %v333 = vld [vmem:[%s241 + $0x28] sm:$0xff]
        %v334 = vld [vmem:[%s241 + $0x30] sm:$0xff]
        %v335 = vld [vmem:[%s241 + $0x38] sm:$0xff]
        %v336 = vld [vmem:[%s241 + $0x40] sm:$0xff]
        %v337 = vld [vmem:[%s241 + $0x48] sm:$0xff]
        %v338 = vld [vmem:[%s241 + $0x50] sm:$0xff]
        %v339 = vld [vmem:[%s241 + $0x58] sm:$0xff]
        %v340 = vld [vmem:[%s241 + $0x60] sm:$0xff]
        %v341 = vld [vmem:[%s241 + $0x68] sm:$0xff]
        %v342 = vld [vmem:[%s241 + $0x70] sm:$0xff]
        %v343 = vld [vmem:[%s241 + $0x78] sm:$0xff]
        %v344 = vld [vmem:[%s241 + $0x80] sm:$0xff]
        %v345 = vld [vmem:[%s241 + $0x88] sm:$0xff]
        %v346 = vld [vmem:[%s241 + $0x90] sm:$0xff]
        %v347 = vld [vmem:[%s241 + $0x98] sm:$0xff]
        %v348 = vld [vmem:[%s241 + $0xa0] sm:$0xff]
        %v349 = vld [vmem:[%s241 + $0xa8] sm:$0xff]
        %v350 = vld [vmem:[%s241 + $0xb0] sm:$0xff]
        %v351 = vld [vmem:[%s241 + $0xb8] sm:$0xff]
        %v352 = vld [vmem:[%s241 + $0xc0] sm:$0xff]
        %v353 = vld [vmem:[%s241 + $0xc8] sm:$0xff]
        %v354 = vld [vmem:[%s241 + $0xd0] sm:$0xff]
        %v355 = vld [vmem:[%s241 + $0xd8] sm:$0xff]
        %v356 = vld [vmem:[%s241 + $0xe0] sm:$0xff]
        %v357 = vld [vmem:[%s241 + $0xe8] sm:$0xff]
        %v358 = vld [vmem:[%s241 + $0xf0] sm:$0xff]
        %v359 = vld [vmem:[%s241 + $0xf8] sm:$0xff]
        %360 = vmatprep.subr.mxu0 %v329
        %361 = vmatpush1.msra.mxu0 %v328
        %362 = vmatprep.subr.mxu0 %v331
        %363 = vmatpush1.msra.mxu0 %v330
        %364 = vmatprep.subr.mxu0 %v333
        %365 = vmatpush1.msra.mxu0 %v332
        %366 = vmatprep.subr.mxu0 %v335
        %367 = vmatpush1.msra.mxu0 %v334
        %368 = vmatprep.subr.mxu0 %v337
        %369 = vmatpush1.msra.mxu0 %v336
        %370 = vmatprep.subr.mxu0 %v339
        %371 = vmatpush1.msra.mxu0 %v338
        %372 = vmatprep.subr.mxu0 %v341
        %373 = vmatpush1.msra.mxu0 %v340
        %374 = vmatprep.subr.mxu0 %v343
        %375 = vmatpush1.msra.mxu0 %v342
        %376 = vmatprep.subr.mxu0 %v345
        %377 = vmatpush1.msra.mxu0 %v344
        %378 = vmatprep.subr.mxu0 %v347
        %379 = vmatpush1.msra.mxu0 %v346
        %380 = vmatprep.subr.mxu0 %v349
        %381 = vmatpush1.msra.mxu0 %v348
        %382 = vmatprep.subr.mxu0 %v351
        %383 = vmatpush1.msra.mxu0 %v350
        %384 = vmatprep.subr.mxu0 %v353
        %385 = vmatpush1.msra.mxu0 %v352
        %386 = vmatprep.subr.mxu0 %v355
        %387 = vmatpush1.msra.mxu0 %v354
        %388 = vmatprep.subr.mxu0 %v357
        %389 = vmatpush1.msra.mxu0 %v356
        %390 = vmatprep.subr.mxu0 %v359
        %391 = vmatpush1.msra.mxu0 %v358
        %392 = vmatprep.subr.mxu0 0.0
        %393 = vmatpush1.msra.mxu0 0.0
        %394 = vmatprep.subr.mxu0 0.0
        %395 = vmatpush1.msra.mxu0 0.0
        %396 = vmatprep.subr.mxu0 0.0
        %397 = vmatpush1.msra.mxu0 0.0
        %398 = vmatprep.subr.mxu0 0.0
        %399 = vmatpush1.msra.mxu0 0.0
        %400 = vmatprep.subr.mxu0 0.0
        %401 = vmatpush1.msra.mxu0 0.0
        %402 = vmatprep.subr.mxu0 0.0
        %403 = vmatpush1.msra.mxu0 0.0
        %404 = vmatprep.subr.mxu0 0.0
        %405 = vmatpush1.msra.mxu0 0.0
        %406 = vmatprep.subr.mxu0 0.0
        %407 = vmatpush1.msra.mxu0 0.0
        %408 = vmatprep.subr.mxu0 0.0
        %409 = vmatpush1.msra.mxu0 0.0
        %410 = vmatprep.subr.mxu0 0.0
        %411 = vmatpush1.msra.mxu0 0.0
        %412 = vmatprep.subr.mxu0 0.0
        %413 = vmatpush1.msra.mxu0 0.0
        %414 = vmatprep.subr.mxu0 0.0
        %415 = vmatpush1.msra.mxu0 0.0
        %416 = vmatprep.subr.mxu0 0.0
        %417 = vmatpush1.msra.mxu0 0.0
        %418 = vmatprep.subr.mxu0 0.0
        %419 = vmatpush1.msra.mxu0 0.0
        %420 = vmatprep.subr.mxu0 0.0
        %421 = vmatpush1.msra.mxu0 0.0
        %422 = vmatprep.subr.mxu0 0.0
        %423 = vmatpush1.msra.mxu0 0.0
        %424 = vmatprep.mubr.f32.mxu0 0.0
        %425 = vmatmul.mubr.f32.gmra.mrb[0].mxu0 %v322
        %v426 = vpop.f32.mrb[0].mxu0
        %v427 = vadd.f32 0.0, %v426
        %v428 = vpop.f32.mrb[0].mxu0
        %v429 = vadd.f32 0.0, %v428
        %430 = vmatprep.mubr.f32.mxu0 0.0
        %431 = vmatmul.mubr.f32.gmra.mrb[0].mxu0 %v323
        %v432 = vpop.f32.mrb[0].mxu0
        %v433 = vadd.f32 0.0, %v432
        %v434 = vpop.f32.mrb[0].mxu0
        %v435 = vadd.f32 0.0, %v434
        %436 = vmatprep.mubr.f32.mxu0 0.0
        %437 = vmatmul.mubr.f32.gmra.mrb[0].mxu0 %v324
        %v438 = vpop.f32.mrb[0].mxu0
        %v439 = vadd.f32 0.0, %v438
        %v440 = vpop.f32.mrb[0].mxu0
        %v441 = vadd.f32 0.0, %v440
        %442 = vmatprep.mubr.f32.mxu0 0.0
        %443 = vmatmul.mubr.f32.gmra.mrb[0].mxu0 %v325
        %v444 = vpop.f32.mrb[0].mxu0
        %v445 = vadd.f32 0.0, %v444
        %v446 = vpop.f32.mrb[0].mxu0
        %v447 = vadd.f32 0.0, %v446
        %448 = vmatprep.mubr.f32.mxu0 0.0
        %449 = vmatmul.mubr.f32.gmra.mrb[0].mxu0 %v326
        %v450 = vpop.f32.mrb[0].mxu0
        %v451 = vadd.f32 0.0, %v450
        %v452 = vpop.f32.mrb[0].mxu0
        %v453 = vadd.f32 0.0, %v452
        %454 = vmatprep.mubr.f32.mxu0 0.0
        %455 = vmatmul.mubr.f32.gmra.mrb[0].mxu0 %v327
        %v456 = vpop.f32.mrb[0].mxu0
        %v457 = vadd.f32 0.0, %v456
        %v458 = vpop.f32.mrb[0].mxu0
        %v459 = vadd.f32 0.0, %v458
        %460 = vdwg.mxu0
        %v461 = vadd.f32 %v310, %v427
        %v462 = vadd.f32 %v311, %v429
        %v463 = vadd.f32 %v312, %v433
        %v464 = vadd.f32 %v313, %v435
        %v465 = vadd.f32 %v314, %v439
        %v466 = vadd.f32 %v315, %v441
        %v467 = vadd.f32 %v316, %v445
        %v468 = vadd.f32 %v317, %v447
        %v469 = vadd.f32 %v318, %v451
        %v470 = vadd.f32 %v319, %v453
        %v471 = vadd.f32 %v320, %v457
        %v472 = vadd.f32 %v321, %v459
        %473 = vst [vmem:[#allocation2] sm:$0xff] %v461
        %474 = vst [vmem:[#allocation2 + $0x8] sm:$0xff] %v462
        %475 = vst [vmem:[#allocation2 + $0x10] sm:$0xff] %v463
        %476 = vst [vmem:[#allocation2 + $0x18] sm:$0xff] %v464
        %477 = vst [vmem:[#allocation2 + $0x20] sm:$0xff] %v465
        %478 = vst [vmem:[#allocation2 + $0x28] sm:$0xff] %v466
        %479 = vst [vmem:[#allocation2 + $0x30] sm:$0xff] %v467
        %480 = vst [vmem:[#allocation2 + $0x38] sm:$0xff] %v468
        %481 = vst [vmem:[#allocation2 + $0x40] sm:$0xff] %v469
        %482 = vst [vmem:[#allocation2 + $0x48] sm:$0xff] %v470
        %483 = vst [vmem:[#allocation2 + $0x50] sm:$0xff] %v471
        %484 = vst [vmem:[#allocation2 + $0x58] sm:$0xff] %v472
        %p485 = scmp.eq.s32.totalorder %s30, 1
        // Predicated region
        $region45: #{tpu_custom_call.1} parent=31 // pred_check
          %p486 = pneg %p485
        $region46: #{tpu_custom_call.1} parent=31 // pred_check_branch
          %488 = sbr.rel (%p486) target = $region48
        $region47: #{tpu_custom_call.1} parent=31 // pred_region
          %v489 = vld [vmem:[#allocation2] sm:$0xff]
          %v490 = vld [vmem:[#allocation2 + $0x10] sm:$0xff]
          %v491 = vld [vmem:[#allocation2 + $0x20] sm:$0xff]
          %v492 = vld [vmem:[#allocation2 + $0x30] sm:$0xff]
          %v493 = vld [vmem:[#allocation2 + $0x40] sm:$0xff]
          %v494 = vld [vmem:[#allocation2 + $0x50] sm:$0xff]
          %v495 = vld [vmem:[#allocation2 + $0x8] sm:$0xff]
          %v496 = vld [vmem:[#allocation2 + $0x18] sm:$0xff]
          %v497 = vld [vmem:[#allocation2 + $0x28] sm:$0xff]
          %v498 = vld [vmem:[#allocation2 + $0x38] sm:$0xff]
          %v499 = vld [vmem:[#allocation2 + $0x48] sm:$0xff]
          %v500 = vld [vmem:[#allocation2 + $0x58] sm:$0xff]
          %v501 = vxor.u32 %v495, 2147483648
          %v502 = vxor.u32 %v496, 2147483648
          %v503 = vxor.u32 %v497, 2147483648
          %v504 = vxor.u32 %v498, 2147483648
          %v505 = vxor.u32 %v499, 2147483648
          %v506 = vxor.u32 %v500, 2147483648
          %v507 = vmul.f32 %v501, 1.442695
          %v508 = vpow.pop %v507
          %v509 = vmul.f32 %v502, 1.442695
          %v510 = vpow.pop %v509
          %v511 = vmul.f32 %v503, 1.442695
          %v512 = vpow.pop %v511
          %v513 = vmul.f32 %v504, 1.442695
          %v514 = vpow.pop %v513
          %v515 = vmul.f32 %v505, 1.442695
          %v516 = vpow.pop %v515
          %v517 = vmul.f32 %v506, 1.442695
          %v518 = vpow.pop %v517
          %v519 = vadd.f32 %v508, 1.0
          %v520 = vadd.f32 %v510, 1.0
          %v521 = vadd.f32 %v512, 1.0
          %v522 = vadd.f32 %v514, 1.0
          %v523 = vadd.f32 %v516, 1.0
          %v524 = vadd.f32 %v518, 1.0
          %v525 = vrcp.pop %v519
          %v526 = vmul.f32 1.0, %v525
          %v527 = vrcp.pop %v520
          %v528 = vmul.f32 1.0, %v527
          %v529 = vrcp.pop %v521
          %v530 = vmul.f32 1.0, %v529
          %v531 = vrcp.pop %v522
          %v532 = vmul.f32 1.0, %v531
          %v533 = vrcp.pop %v523
          %v534 = vmul.f32 1.0, %v533
          %v535 = vrcp.pop %v524
          %v536 = vmul.f32 1.0, %v535
          %v537 = vmul.f32 %v495, %v526
          %v538 = vmul.f32 %v496, %v528
          %v539 = vmul.f32 %v497, %v530
          %v540 = vmul.f32 %v498, %v532
          %v541 = vmul.f32 %v499, %v534
          %v542 = vmul.f32 %v500, %v536
          %v543 = vmul.f32 %v489, %v537
          %v544 = vmul.f32 %v490, %v538
          %v545 = vmul.f32 %v491, %v539
          %v546 = vmul.f32 %v492, %v540
          %v547 = vmul.f32 %v493, %v541
          %v548 = vmul.f32 %v494, %v542
          %549 = vst [vmem:[%s272] sm:$0xff] %v543
          %550 = vst [vmem:[%s272 + $0x8] sm:$0xff] %v544
          %551 = vst [vmem:[%s272 + $0x10] sm:$0xff] %v545
          %552 = vst [vmem:[%s272 + $0x18] sm:$0xff] %v546
          %553 = vst [vmem:[%s272 + $0x20] sm:$0xff] %v547
          %554 = vst [vmem:[%s272 + $0x28] sm:$0xff] %v548
        $region48: #{tpu_custom_call.1} parent=31 // pred_fallthru
          _
        %s555 = sand.u32 %s134, 1
        %s556 = scalar_lea.sflag [#allocation5], %s555
        %s557 = sand.u32 %s134, 1
        %s558 = smul.addr %s557, 48
        %s559 = scalar_lea.vmem [#allocation8], %s558
        // Predicated region
        $region49: #{tpu_custom_call.1} parent=31 // pred_check
          %p560 = pneg %p144
        $region50: #{tpu_custom_call.1} parent=31 // pred_check_branch
          %562 = sbr.rel (%p560) target = $region52
        $region51: #{tpu_custom_call.1} parent=31 // pred_region
          %s563 = smul.u32 6, %s28
          %s565 = ssub.s32 768, 768
          %566 = vsyncadd %s556, %s565
          %s567 = smul.addr %s563, 2
          %s568 = sadd.s32 %s29, %s567
          %s569 = smul.addr %s568, 128
          %s570 = scalar_lea.hbm %s3, %s569
          %s571 = sshll.u32 %s559, 4
          %s572 = int_to_ptr.vmem [resolvable:$true] %s571
          %577 = dma.vmem_to_hbm [thread:$0]  %s572, 768, %s570, %s556, 128, 256, 8
        $region52: #{tpu_custom_call.1} parent=31 // pred_fallthru
          _
      $region32: #{tpu_custom_call.1} parent=5 // pred_fallthru
        _
      %p578 = scmp.le.s32.totalorder 2, %s18
      // Predicated region
      $region53: #{tpu_custom_call.1} parent=5 // pred_check
        %p579 = pneg %p578
      $region54: #{tpu_custom_call.1} parent=5 // pred_check_branch
        %581 = sbr.rel (%p579) target = $region56
      $region55: #{tpu_custom_call.1} parent=5 // pred_region
        %s582 = ssub.s32 %s18, 2
        // Predicated region
        $region57: #{tpu_custom_call.1} parent=55 // pred_check
          %p583 = pneg %p150
        $region58: #{tpu_custom_call.1} parent=55 // pred_check_branch
          %585 = sbr.rel (%p583) target = $region60
        $region59: #{tpu_custom_call.1} parent=55 // pred_region
          %s586 = sand.u32 %s135, 1
          %s587 = scalar_lea.sflag [#allocation5], %s586
          %s588 = sand.u32 %s135, 1
          %s589 = smul.addr %s588, 48
          %s590 = scalar_lea.vmem [#allocation8], %s589
          %591 = dma.done %s587, 768
        $region60: #{tpu_custom_call.1} parent=55 // pred_fallthru
          _
      $region56: #{tpu_custom_call.1} parent=5 // pred_fallthru
        _
    $region6: #{tpu_custom_call.1} parent=1 // loop_footer
      %s22 = sadd.s32 1, %s18
    $region7: #{tpu_custom_call.1} parent=1 // loop_footer_branch
      %17 = sbr.rel target = $region3
    $region8: #{tpu_custom_call.1} parent=1 // loop_exit
      _
    %592 = vsyncpa [#allocation4], 1
    %s593 = scalar_lea.sflag [#allocation4], 1
    %594 = vsyncpa %s593, 1
    %595 = vsyncpa [#allocation7], 1
    %s596 = scalar_lea.sflag [#allocation7], 1
    %597 = vsyncpa %s596, 1
    %598 = vsyncpa [#allocation5], 1
    %s599 = scalar_lea.sflag [#allocation5], 1
    %600 = vsyncpa %s599, 1

</llo_original>
